<compile_context>
chip_gen: v7x
topology: tpu7x:2x2x1
jax: 0.10.0
libtpu: 0.0.40
codegen_flags: <defaults>
</compile_context>

<pallas_src>
import jax
import jax.numpy as jnp
from jax import lax
from jax.experimental import pallas as pl
from jax.experimental.pallas import tpu as pltpu

INPUT_NUM = 48
HIDDEN_NUM = 2
OUTPUT_NUM = 1
_PAD_H = 8          # hidden units padded to one full sublane group


def _round_up(x, m):
    return ((x + m - 1) // m) * m


def shallow_nn_kernel(x_ref, w1p_ref, pep_ref, out_ref):
    # x_ref  : (tb, 48)  batch tile, exactly as stored in HBM (row-major)
    # w1p_ref: (8, 48)   hidden.weight zero-padded from 2 to 8 rows
    # pep_ref: (8, 3)    packed epilogue params: [:,0]=b1, [:,1]=w2, [0,2]=b2
    # out_ref: (1, tb)   lane-dense output tile (batch on lanes)
    x = x_ref[...]
    w1p = w1p_ref[...]
    b1p = pep_ref[:, 0:1]                                    # (8, 1)
    w2p = pep_ref[:, 1:2]                                    # (8, 1)
    b2 = pep_ref[0:1, 2:3]                                   # (1, 1)

    # Hidden layer on the MXU: contract the 48-feature axis of both operands
    # ("NT" matmul, same structure as q @ k.T in attention).  Result (8, tb)
    # puts the batch on lanes, so everything downstream is lane-dense.
    h = lax.dot_general(w1p, x, (((1,), (1,)), ((), ())),
                        preferred_element_type=jnp.float32)  # (8, tb)
    h = jnp.maximum(h + b1p, 0.0)                            # ReLU; pad rows stay 0

    # Output layer: weighted sublane reduction (XLU) + bias, sigmoid on EUP.
    o = jnp.sum(h * w2p, axis=0, keepdims=True) + b2         # (1, tb)
    out_ref[...] = jax.nn.sigmoid(o).astype(out_ref.dtype)


def shallow_nn_forward(x, w1, b1, w2, b2, *, block_b=32768, min_blocks=4):
    """Fused forward pass: sigmoid(relu(x @ w1.T + b1) @ w2.T + b2).

    x : (B, 48) f32                      w1: (2, 48) = hidden.weight
    b1: (2,)    = hidden.bias            w2: (1, 2)  = output.weight
    b2: (1,)    = output.bias            returns (B, 1) f32
    """
    batch = x.shape[0]
    assert x.shape[1] == INPUT_NUM

    # Lane-dense batch tile: multiple of 128, capped by block_b (VMEM /
    # roofline sweet spot) and so that there are >= min_blocks grid steps when
    # the batch is big enough (both v7x TensorCores get work + pipelining).
    b128 = _round_up(batch, 128)
    tb = min(block_b, max(128, _round_up(pl.cdiv(b128, min_blocks), 128)))
    grid = (pl.cdiv(b128, tb),)

    # Tiny trace-time parameter packing (8x48 + 8x3 floats; no pass over x).
    w1p = jnp.zeros((_PAD_H, INPUT_NUM), jnp.float32).at[:HIDDEN_NUM, :].set(w1)
    pep = jnp.zeros((_PAD_H, 3), jnp.float32)
    pep = pep.at[:HIDDEN_NUM, 0].set(b1)
    pep = pep.at[:HIDDEN_NUM, 1].set(w2[0])
    pep = pep.at[0, 2].set(b2[0])

    flops = 2 * batch * (INPUT_NUM * HIDDEN_NUM + HIDDEN_NUM * OUTPUT_NUM)
    bytes_accessed = 4 * (batch * (INPUT_NUM + OUTPUT_NUM)
                          + _PAD_H * (INPUT_NUM + 3))

    out2d = pl.pallas_call(
        shallow_nn_kernel,
        out_shape=jax.ShapeDtypeStruct((OUTPUT_NUM, b128), jnp.float32),
        grid=grid,
        in_specs=[
            pl.BlockSpec((tb, INPUT_NUM), lambda i: (i, 0)),       # x tile
            pl.BlockSpec((_PAD_H, INPUT_NUM), lambda i: (0, 0)),   # w1 (resident)
            pl.BlockSpec((_PAD_H, 3), lambda i: (0, 0)),           # b1/w2/b2 pack
        ],
        out_specs=pl.BlockSpec((OUTPUT_NUM, tb), lambda i: (0, i)),
        compiler_params=pltpu.CompilerParams(
            # Batch tiles are independent: shards across both TensorCores on
            # v7x, harmless no-op on single-TC v5e/v6e.
            dimension_semantics=("parallel",),
            # ~14 MiB live at tb=32768 (12.6 MiB double-buffered input + the
            # (8, tb) hidden tile); 32 MiB gives 2x headroom and stays well
            # under v7x's 64 MiB physical VMEM.
            vmem_limit_bytes=32 * 1024 * 1024),
        cost_estimate=pl.CostEstimate(
            flops=flops,
            transcendentals=2 * batch,          # sigmoid ~ exp + reciprocal
            bytes_accessed=bytes_accessed),
    )(x, w1p, pep)

    return out2d[:, :batch].T                                 # (B, 1)


def init_params(key):
    """PyTorch-style nn.Linear init: U(-1/sqrt(fan_in), +1/sqrt(fan_in))."""
    k1, k2, k3, k4 = jax.random.split(key, 4)
    bound1 = 1.0 / jnp.sqrt(jnp.float32(INPUT_NUM))
    bound2 = 1.0 / jnp.sqrt(jnp.float32(HIDDEN_NUM))
    w1 = jax.random.uniform(k1, (HIDDEN_NUM, INPUT_NUM), jnp.float32,
                            minval=-bound1, maxval=bound1)    # hidden.weight
    b1 = jax.random.uniform(k2, (HIDDEN_NUM,), jnp.float32,
                            minval=-bound1, maxval=bound1)    # hidden.bias
    w2 = jax.random.uniform(k3, (OUTPUT_NUM, HIDDEN_NUM), jnp.float32,
                            minval=-bound2, maxval=bound2)    # output.weight
    b2 = jax.random.uniform(k4, (OUTPUT_NUM,), jnp.float32,
                            minval=-bound2, maxval=bound2)    # output.bias
    return w1, b1, w2, b2


if __name__ == "__main__":
    key = jax.random.PRNGKey(0)
    k_x, k_p = jax.random.split(key)

    # Snap test values to bf16-representable f32 so the correctness check is
    # exact no matter how the MXU emulates the f32 contraction (single bf16
    # pass vs multi-pass); the kernel itself runs plain f32 semantics.
    def bf16_snap(a):
        return a.astype(jnp.bfloat16).astype(jnp.float32)

    w1, b1, w2, b2 = (bf16_snap(p) for p in init_params(k_p))

    def reference(xv):
        h = jnp.maximum(
            jnp.einsum("bk,hk->bh", xv, w1,
                       precision=lax.Precision.HIGHEST) + b1, 0.0)
        o = h[:, 0:1] * w2[0, 0] + h[:, 1:2] * w2[0, 1] + b2[0]
        return jax.nn.sigmoid(o)

    # batch=8: single (ragged) block.  batch=600: 3 blocks including a ragged
    # edge -> exercises the cdiv grid and the lane-dense output slicing.
    for batch in (8, 600):
        xb = bf16_snap(jax.random.normal(jax.random.fold_in(k_x, batch),
                                         (batch, INPUT_NUM), jnp.float32))
        out = shallow_nn_forward(xb, w1, b1, w2, b2)
        jax.block_until_ready(out)
        assert out.shape == (batch, OUTPUT_NUM)
        assert jnp.allclose(out, reference(xb), atol=1e-5, rtol=1e-5), (
            float(jnp.max(jnp.abs(out - reference(xb)))))

    print("KERNEL_OK")
</pallas_src>

<mosaic_0001>
module attributes {stable_mosaic.version = 11 : i64} {
  func.func @shallow_nn_kernel(%arg0: i32, %arg1: memref<128x48xf32, #tpu.memory_space<vmem>>, %arg2: memref<8x48xf32, #tpu.memory_space<vmem>>, %arg3: memref<8x3xf32, #tpu.memory_space<vmem>>, %arg4: memref<1x128xf32, #tpu.memory_space<vmem>>) attributes {dimension_semantics = [#tpu.dimension_semantics<parallel>], iteration_bounds = array<i64: 1>, scalar_prefetch = 0 : i64, scratch_operands = 0 : i64, tpu.core_type = #tpu.core_type<tc>, window_params = [{transform_indices = @transform_0, window_bounds = array<i64: 128, 48>}, {pipeline_mode = #tpu.pipeline_mode<synchronous>, transform_indices = @transform_1, window_bounds = array<i64: 8, 48>}, {pipeline_mode = #tpu.pipeline_mode<synchronous>, transform_indices = @transform_2, window_bounds = array<i64: 8, 3>}, {transform_indices = @transform_3, window_bounds = array<i64: 1, 128>}]} {
    %c0 = arith.constant 0 : index
    %c0_0 = arith.constant 0 : index
    %0 = vector.load %arg1[%c0, %c0_0] : memref<128x48xf32, #tpu.memory_space<vmem>>, vector<128x48xf32>
    %c0_1 = arith.constant 0 : index
    %c0_2 = arith.constant 0 : index
    %1 = vector.load %arg2[%c0_1, %c0_2] : memref<8x48xf32, #tpu.memory_space<vmem>>, vector<8x48xf32>
    %c0_3 = arith.constant 0 : index
    %c0_4 = arith.constant 0 : index
    %2 = vector.load %arg3[%c0_3, %c0_4] : memref<8x3xf32, #tpu.memory_space<vmem>>, vector<8x1xf32>
    %c0_5 = arith.constant 0 : index
    %c1 = arith.constant 1 : index
    %3 = vector.load %arg3[%c0_5, %c1] : memref<8x3xf32, #tpu.memory_space<vmem>>, vector<8x1xf32>
    %c0_6 = arith.constant 0 : index
    %c2 = arith.constant 2 : index
    %4 = vector.load %arg3[%c0_6, %c2] : memref<8x3xf32, #tpu.memory_space<vmem>>, vector<1x1xf32>
    %cst = arith.constant dense<0.000000e+00> : vector<8x128xf32>
    %5 = tpu.matmul %1, %0, %cst {dimension_numbers = #tpu.dot_dimension_numbers<[1], [1], [0], [0], [0, 0, 1, 0], [], []>} : vector<8x48xf32>, vector<128x48xf32>, vector<8x128xf32> -> vector<8x128xf32>
    %6 = vector.broadcast %2 : vector<8x1xf32> to vector<8x128xf32>
    %7 = arith.addf %5, %6 : vector<8x128xf32>
    %cst_7 = arith.constant 0.000000e+00 : f32
    %8 = vector.broadcast %cst_7 : f32 to vector<8x128xf32>
    %9 = arith.maximumf %7, %8 : vector<8x128xf32>
    %10 = vector.broadcast %3 : vector<8x1xf32> to vector<8x128xf32>
    %11 = arith.mulf %9, %10 : vector<8x128xf32>
    %cst_8 = arith.constant dense<0.000000e+00> : vector<128xf32>
    %12 = vector.multi_reduction <add>, %11, %cst_8 [0] : vector<8x128xf32> to vector<128xf32>
    %13 = vector.shape_cast %12 : vector<128xf32> to vector<1x128xf32>
    %14 = vector.broadcast %4 : vector<1x1xf32> to vector<1x128xf32>
    %15 = arith.addf %13, %14 : vector<1x128xf32>
    %16 = arith.negf %15 : vector<1x128xf32>
    %17 = math.exp %16 : vector<1x128xf32>
    %cst_9 = arith.constant 1.000000e+00 : f32
    %18 = vector.broadcast %cst_9 : f32 to vector<1x128xf32>
    %19 = arith.addf %18, %17 : vector<1x128xf32>
    %20 = arith.divf %18, %19 : vector<1x128xf32>
    %c0_10 = arith.constant 0 : index
    %c0_11 = arith.constant 0 : index
    %21 = vector.load %arg4[%c0_10, %c0_11] : memref<1x128xf32, #tpu.memory_space<vmem>>, vector<1x128xf32>
    tpu.vector_store %arg4[%c0_10, %c0_11], %20 {strides = array<i32>} : memref<1x128xf32, #tpu.memory_space<vmem>>, vector<1x128xf32>,
    return
  }
  func.func @transform_0(%arg0: i32) -> (i32, i32) {
    %c0_i32 = arith.constant 0 : i32
    %c0_i32_0 = arith.constant 0 : i32
    return %arg0, %c0_i32 : i32, i32
  }
  func.func @transform_1(%arg0: i32) -> (i32, i32) {
    %c0_i32 = arith.constant 0 : i32
    %c0_i32_0 = arith.constant 0 : i32
    %c0_i32_1 = arith.constant 0 : i32
    return %c0_i32, %c0_i32_0 : i32, i32
  }
  func.func @transform_2(%arg0: i32) -> (i32, i32) {
    %c0_i32 = arith.constant 0 : i32
    %c0_i32_0 = arith.constant 0 : i32
    %c0_i32_1 = arith.constant 0 : i32
    return %c0_i32, %c0_i32_0 : i32, i32
  }
  func.func @transform_3(%arg0: i32) -> (i32, i32) {
    %c0_i32 = arith.constant 0 : i32
    %c0_i32_0 = arith.constant 0 : i32
    return %c0_i32, %arg0 : i32, i32
  }
}

</mosaic_0001>

<llo_original>
// kernel: tpu_custom_call.1
$region0: #{tpu_custom_call.1}
  #allocation0 [shape = 'u32[]', space=smem, size = 0x4, offset = 0x4, fixed_abs, tag = 'smem constant byte address 0x4 - core index']
  #allocation1 [shape = 'u32[144,128]{1,0:T(1,128)}', space=vmem, size = 0x12000, scoped, tag = 'internal scratch']
  %s0 = inlined_call_operand.vmem [shape: f32[8,48], index: 0, kind: input, shape index: {}]
  %s1 = inlined_call_operand.hbm [shape: f32[8,48], index: 1, kind: input, shape index: {}]
  %s2 = inlined_call_operand.vmem [shape: f32[8,3], index: 2, kind: input, shape index: {}]
  %s3 = inlined_call_operand.hbm [shape: f32[1,128], index: 3, kind: output, shape index: {}]
  %s4 = sld [smem:[#allocation0]]
  $region26: #{tpu_custom_call.1} parent=0
    _
  %s6 = ssub.s32 1, %s4
  %s7 = scalar_select 0, %s6, %s4
  $region1: #{tpu_custom_call.1} parent=0
    #allocation2 [shape = 'u8[4096]{0}', space=vmem, size = 0x1000, scoped, tag = 'input window, operand 1, single buffered']
    #allocation3 [shape = 's32[1]{0}', space=sflag, size = 0x4, scoped, tag = 'scoped memory for tpu_custom_call.1']
    #allocation4 [shape = 's32[1]{0}', space=sflag, size = 0x4, scoped, tag = 'scoped memory for tpu_custom_call.1']
    #allocation5 [shape = 'u8[512]{0}', space=vmem, size = 0x400, scoped, tag = 'output window, operand 0, single buffered']
    %8 = vsyncpa [#allocation3], 0
    %9 = vsyncpa [#allocation4], 0
    // Predicated region
    $region2: #{tpu_custom_call.1} parent=1 // pred_check
      _
    $region3: #{tpu_custom_call.1} parent=1 // pred_check_branch
      %11 = sbr.rel (0) target = $region5
    $region4: #{tpu_custom_call.1} parent=1 // pred_region
      _
    $region5: #{tpu_custom_call.1} parent=1 // pred_fallthru
      _
    // Predicated region
    $region6: #{tpu_custom_call.1} parent=1 // pred_check
      _
    $region7: #{tpu_custom_call.1} parent=1 // pred_check_branch
      %13 = sbr.rel (0) target = $region9
    $region8: #{tpu_custom_call.1} parent=1 // pred_region
      %s15 = ssub.s32 128, 128
      %16 = vsyncadd [#allocation3], %s15
      %s18 = sshll.u32 [#allocation2], 4
      %s19 = int_to_ptr.vmem [resolvable:$true] %s18
      %21 = dma.hbm_to_vmem [thread:$0]  %s1, 128, %s19, [#allocation3]
    $region9: #{tpu_custom_call.1} parent=1 // pred_fallthru
      _
    // Predicated region
    $region10: #{tpu_custom_call.1} parent=1 // pred_check
      _
    $region11: #{tpu_custom_call.1} parent=1 // pred_check_branch
      %23 = sbr.rel (0) target = $region13
    $region12: #{tpu_custom_call.1} parent=1 // pred_region
      _
    $region13: #{tpu_custom_call.1} parent=1 // pred_fallthru
      _
    // Predicated region
    $region14: #{tpu_custom_call.1} parent=1 // pred_check
      _
    $region15: #{tpu_custom_call.1} parent=1 // pred_check_branch
      %25 = sbr.rel (0) target = $region17
    $region16: #{tpu_custom_call.1} parent=1 // pred_region
      %26 = dma.done [#allocation3], 128
    $region17: #{tpu_custom_call.1} parent=1 // pred_fallthru
      _
    %v27 = vld [vmem:[%s0] sm:$0xff]
    %v28 = vld [vmem:[%s0 + $0x8] sm:$0xff]
    %v29 = vld [vmem:[%s0 + $0x10] sm:$0xff]
    %v30 = vld [vmem:[%s0 + $0x18] sm:$0xff]
    %v31 = vld [vmem:[%s0 + $0x20] sm:$0xff]
    %v32 = vld [vmem:[%s0 + $0x28] sm:$0xff]
    %v33 = vld [vmem:[%s0 + $0x30] sm:$0xff]
    %v34 = vld [vmem:[%s0 + $0x38] sm:$0xff]
    %v35 = vld [vmem:[%s0 + $0x40] sm:$0xff]
    %v36 = vld [vmem:[%s0 + $0x48] sm:$0xff]
    %v37 = vld [vmem:[%s0 + $0x50] sm:$0xff]
    %v38 = vld [vmem:[%s0 + $0x58] sm:$0xff]
    %v39 = vld [vmem:[%s0 + $0x60] sm:$0xff]
    %v40 = vld [vmem:[%s0 + $0x68] sm:$0xff]
    %v41 = vld [vmem:[%s0 + $0x70] sm:$0xff]
    %v42 = vld [vmem:[%s0 + $0x78] sm:$0xff]
    %v43 = vld [vmem:[#allocation2] sm:$0xff]
    %v44 = vld [vmem:[%s2] sm:$0xff]
    %v45 = vld [vmem:[%s2] sm:$0x1]
    %47 = vset.pattern.permute.xlu0 0
    %48 = vperm.xlu0 %47, %v44
    %v49 = vpop.permute.xlu0 %48
    %vm51 = vcmask 392192
    %v53 = vsel %vm51, %v43, 0
    %v56 = vsel %vm51, %v27, 0
    %v59 = vsel %vm51, %v28, 0
    %v62 = vsel %vm51, %v29, 0
    %v65 = vsel %vm51, %v30, 0
    %v68 = vsel %vm51, %v31, 0
    %v71 = vsel %vm51, %v32, 0
    %v74 = vsel %vm51, %v33, 0
    %v77 = vsel %vm51, %v34, 0
    %v80 = vsel %vm51, %v35, 0
    %v83 = vsel %vm51, %v36, 0
    %v86 = vsel %vm51, %v37, 0
    %v89 = vsel %vm51, %v38, 0
    %v92 = vsel %vm51, %v39, 0
    %v95 = vsel %vm51, %v40, 0
    %v98 = vsel %vm51, %v41, 0
    %v101 = vsel %vm51, %v42, 0
    %103 = vmatprep.subr.mxu0 0.0
    %104 = vmatpush1.xpose.msra.mxu0 %v56
    %105 = vmatprep.subr.mxu0 0.0
    %106 = vmatpush1.xpose.msra.mxu0 %v59
    %107 = vmatprep.subr.mxu0 0.0
    %108 = vmatpush1.xpose.msra.mxu0 %v62
    %109 = vmatprep.subr.mxu0 0.0
    %110 = vmatpush1.xpose.msra.mxu0 %v65
    %111 = vmatprep.subr.mxu0 0.0
    %112 = vmatpush1.xpose.msra.mxu0 %v68
    %113 = vmatprep.subr.mxu0 0.0
    %114 = vmatpush1.xpose.msra.mxu0 %v71
    %115 = vmatprep.subr.mxu0 0.0
    %116 = vmatpush1.xpose.msra.mxu0 %v74
    %117 = vmatprep.subr.mxu0 0.0
    %118 = vmatpush1.xpose.msra.mxu0 %v77
    %119 = vmatprep.subr.mxu0 0.0
    %120 = vmatpush1.xpose.msra.mxu0 %v80
    %121 = vmatprep.subr.mxu0 0.0
    %122 = vmatpush1.xpose.msra.mxu0 %v83
    %123 = vmatprep.subr.mxu0 0.0
    %124 = vmatpush1.xpose.msra.mxu0 %v86
    %125 = vmatprep.subr.mxu0 0.0
    %126 = vmatpush1.xpose.msra.mxu0 %v89
    %127 = vmatprep.subr.mxu0 0.0
    %128 = vmatpush1.xpose.msra.mxu0 %v92
    %129 = vmatprep.subr.mxu0 0.0
    %130 = vmatpush1.xpose.msra.mxu0 %v95
    %131 = vmatprep.subr.mxu0 0.0
    %132 = vmatpush1.xpose.msra.mxu0 %v98
    %133 = vmatprep.subr.mxu0 0.0
    %134 = vmatpush1.xpose.msra.mxu0 %v101
    %135 = vmatprep.subr.mxu0 0.0
    %136 = vmatpush1.xpose.msra.mxu0 0.0
    %137 = vmatprep.subr.mxu0 0.0
    %138 = vmatpush1.xpose.msra.mxu0 0.0
    %139 = vmatprep.subr.mxu0 0.0
    %140 = vmatpush1.xpose.msra.mxu0 0.0
    %141 = vmatprep.subr.mxu0 0.0
    %142 = vmatpush1.xpose.msra.mxu0 0.0
    %143 = vmatprep.subr.mxu0 0.0
    %144 = vmatpush1.xpose.msra.mxu0 0.0
    %145 = vmatprep.subr.mxu0 0.0
    %146 = vmatpush1.xpose.msra.mxu0 0.0
    %147 = vmatprep.subr.mxu0 0.0
    %148 = vmatpush1.xpose.msra.mxu0 0.0
    %149 = vmatprep.subr.mxu0 0.0
    %150 = vmatpush1.xpose.msra.mxu0 0.0
    %151 = vmatprep.subr.mxu0 0.0
    %152 = vmatpush1.xpose.msra.mxu0 0.0
    %153 = vmatprep.subr.mxu0 0.0
    %154 = vmatpush1.xpose.msra.mxu0 0.0
    %155 = vmatprep.subr.mxu0 0.0
    %156 = vmatpush1.xpose.msra.mxu0 0.0
    %157 = vmatprep.subr.mxu0 0.0
    %158 = vmatpush1.xpose.msra.mxu0 0.0
    %159 = vmatprep.subr.mxu0 0.0
    %160 = vmatpush1.xpose.msra.mxu0 0.0
    %161 = vmatprep.subr.mxu0 0.0
    %162 = vmatpush1.xpose.msra.mxu0 0.0
    %163 = vmatprep.subr.mxu0 0.0
    %164 = vmatpush1.xpose.msra.mxu0 0.0
    %165 = vmatprep.subr.mxu0 0.0
    %166 = vmatpush1.xpose.msra.mxu0 0.0
    %167 = vmatprep.mubr.f32.mxu0 0.0
    %168 = vmatmul.mubr.f32.gmra.mrb[0].mxu0 %v53
    %v169 = vpop.f32.mrb[0].mxu0
    %v170 = vadd.f32 %v49, %v169
    %v171 = vpop.f32.mrb[0].mxu0
    %172 = vdwg.mxu0
    %v173 = vmax.f32 %v170, 0.0
    %174 = vset.pattern.permute.xlu0 1
    %175 = vperm.xlu0 %174, %v44
    %v176 = vpop.permute.xlu0 %175
    %v178 = vmul.f32 %v173, %v176
    %v179 = vrot.slane %v178, 4
    %v180 = vadd.f32 %v178, %v179
    %v181 = vrot.slane %v180, 2
    %v182 = vadd.f32 %v180, %v181
    %v183 = vrot.slane %v182, 1
    %v184 = vadd.f32 %v182, %v183
    %186 = vset.pattern.permute.xlu0 2
    %187 = vperm.xlu0 %186, %v45
    %v188 = vpop.permute.xlu0 %187
    %v190 = vadd.f32 %v184, %v188
    %v191 = vxor.u32 %v190, 2147483648
    %v192 = vmul.f32 %v191, 1.442695
    %v193 = vpow.pop %v192
    %v194 = vadd.f32 %v193, 1.0
    %v195 = vrcp.pop %v194
    %v196 = vmul.f32 1.0, %v195
    %197 = vst [vmem:[#allocation5] sm:$0x1] %v196
    // Predicated region
    $region18: #{tpu_custom_call.1} parent=1 // pred_check
      _
    $region19: #{tpu_custom_call.1} parent=1 // pred_check_branch
      %199 = sbr.rel (0) target = $region21
    $region20: #{tpu_custom_call.1} parent=1 // pred_region
      %s201 = ssub.s32 16, 16
      %202 = vsyncadd [#allocation4], %s201
      %s204 = sshll.u32 [#allocation5], 4
      %s205 = int_to_ptr.vmem [resolvable:$true] %s204
      %207 = dma.vmem_to_hbm [thread:$0]  %s205, 16, %s3, [#allocation4]
    $region21: #{tpu_custom_call.1} parent=1 // pred_fallthru
      _
    // Predicated region
    $region22: #{tpu_custom_call.1} parent=1 // pred_check
      _
    $region23: #{tpu_custom_call.1} parent=1 // pred_check_branch
      %209 = sbr.rel (0) target = $region25
    $region24: #{tpu_custom_call.1} parent=1 // pred_region
      %210 = dma.done [#allocation4], 16
    $region25: #{tpu_custom_call.1} parent=1 // pred_fallthru
      _
    %211 = vsyncpa [#allocation3], 1
    %212 = vsyncpa [#allocation4], 1

</llo_original>
